<compile_context>
chip_gen: v6e
topology: v6e:2x2x1
jax: 0.10.0
libtpu: 0.0.40
codegen_flags: <defaults>
</compile_context>

<pallas_src>
import functools

import jax
import jax.numpy as jnp
from jax import lax
from jax.experimental import pallas as pl
from jax.experimental.pallas import tpu as pltpu


def _round_up(x, m):
    return (x + m - 1) // m * m


def bert_embedding_kernel(
    tok_ref,        # SMEM (B, S_pad)        int32   [scalar prefetch]
    seg_ref,        # VMEM (1, tile_s, 1)    int32
    word_hbm,       # HBM  (V, E)            table dtype (memory_space=ANY)
    tt_ref,         # VMEM (tt_rows, E)      table dtype (zero-padded rows)
    pos_ref,        # VMEM (tile_s, E)       table dtype
    gamma_ref,      # VMEM (1, E)            float32
    beta_ref,       # VMEM (1, E)            float32
    out_ref,        # VMEM (1, tile_s, E)    float32
    wbuf,           # VMEM scratch (tile_s, E) table dtype  (gathered word rows)
    sem,            # DMA semaphore (1,)
    *, eps, num_token_types):
    tile_s, E = wbuf.shape
    b = pl.program_id(0)
    s_start = pl.program_id(1) * tile_s

    # ---- 1) word-embedding row gather: one HBM -> VMEM DMA per token -------
    @pl.loop(0, tile_s)
    def _issue(r):
        tid = tok_ref[b, s_start + r]
        pltpu.make_async_copy(word_hbm.at[pl.ds(tid, 1)],
                              wbuf.at[pl.ds(r, 1)],
                              sem.at[0]).start()

    # ---- 2) token-type embedding: VPU selects over the tiny type table -----
    #         (pure vector work; overlaps the in-flight gather DMAs)
    segs = seg_ref[0]                                     # (tile_s, 1) int32
    t_emb = jnp.zeros((tile_s, E), jnp.float32)
    for t in range(num_token_types):                      # static, tiny (=2)
        t_emb = t_emb + jnp.where(segs == t,
                                  tt_ref[t:t + 1, :].astype(jnp.float32),
                                  0.0)
    base = t_emb + pos_ref[...].astype(jnp.float32)

    # ---- 3) drain the gather DMAs (same-size copies on a shared semaphore) --
    @pl.loop(0, tile_s)
    def _drain(r):
        pltpu.make_async_copy(word_hbm.at[pl.ds(0, 1)],
                              wbuf.at[pl.ds(r, 1)],
                              sem.at[0]).wait()

    emb = wbuf[...].astype(jnp.float32) + base            # (tile_s, E) f32

    # ---- 4) LayerNorm (biased variance, eps inside rsqrt; torch semantics) --
    mean = jnp.mean(emb, axis=-1, keepdims=True)
    centered = emb - mean
    var = jnp.mean(centered * centered, axis=-1, keepdims=True)
    norm = centered * lax.rsqrt(var + eps)

    # Dropout: identity at inference time.
    # TODO(synk): training-mode dropout (pltpu.prng_random_bits mask) not emitted.
    out_ref[0] = (norm * gamma_ref[...] + beta_ref[...]).astype(out_ref.dtype)


def bert_embedding(token_ids, segment_ids, word_emb, tt_emb, pos_emb,
                   gamma, beta, *, eps=1e-12, tile_s_target=256):
    """Fused BertEmbedding forward: gather + sum + LayerNorm (dropout = identity)."""
    B, S = token_ids.shape
    V, E = word_emb.shape
    T = tt_emb.shape[0]
    table_dtype = word_emb.dtype

    # Sequence tiling: up to tile_s_target rows per grid step (256 suits v6e/v7x,
    # pass 128 for v5e).  Pad S so all tiles are full and 8-sublane aligned.
    tile_s = min(tile_s_target, _round_up(S, 8))
    s_pad = _round_up(S, tile_s)

    def pad_seq(x):
        if s_pad == S:
            return x
        return jnp.pad(x, ((0, 0), (0, s_pad - S)))       # pad id / type 0

    tok = pad_seq(token_ids.astype(jnp.int32))                       # -> SMEM
    seg3 = pad_seq(segment_ids.astype(jnp.int32)).reshape(B, s_pad, 1)

    # Position rows 0..S-1; padded rows read zeros (their outputs are dropped).
    pos_slice = jnp.zeros((s_pad, E), table_dtype).at[:S].set(
        pos_emb[:S].astype(table_dtype))

    # Tiny token-type table, zero-padded to 8 sublane rows.
    tt_rows = max(8, _round_up(T, 8))
    tt_pad = jnp.zeros((tt_rows, E), table_dtype).at[:T].set(
        tt_emb.astype(table_dtype))

    gamma2 = gamma.reshape(1, E).astype(jnp.float32)
    beta2 = beta.reshape(1, E).astype(jnp.float32)

    kernel = functools.partial(bert_embedding_kernel, eps=eps,
                               num_token_types=T)

    out = pl.pallas_call(
        kernel,
        out_shape=jax.ShapeDtypeStruct((B, s_pad, E), jnp.float32),
        grid_spec=pltpu.PrefetchScalarGridSpec(
            num_scalar_prefetch=1,                          # token ids -> SMEM
            grid=(B, s_pad // tile_s),
            in_specs=[
                pl.BlockSpec((1, tile_s, 1), lambda b, s, tok: (b, s, 0)),   # segment ids
                pl.BlockSpec(memory_space=pl.ANY),                            # word table (HBM)
                pl.BlockSpec((tt_rows, E), lambda b, s, tok: (0, 0)),         # token-type table
                pl.BlockSpec((tile_s, E), lambda b, s, tok: (s, 0)),          # position rows
                pl.BlockSpec((1, E), lambda b, s, tok: (0, 0)),               # LN gamma
                pl.BlockSpec((1, E), lambda b, s, tok: (0, 0)),               # LN beta
            ],
            out_specs=pl.BlockSpec((1, tile_s, E), lambda b, s, tok: (b, s, 0)),
            scratch_shapes=[
                pltpu.VMEM((tile_s, E), table_dtype),       # gathered word rows
                pltpu.SemaphoreType.DMA((1,)),              # shared gather semaphore
            ],
        ),
        compiler_params=pltpu.CompilerParams(
            dimension_semantics=("parallel", "parallel"),
            vmem_limit_bytes=32 * 1024 * 1024,
        ),
    )(tok, seg3, word_emb, tt_pad, pos_slice, gamma2, beta2)

    return out[:, :S, :]


def bert_embedding_reference(token_ids, segment_ids, word_emb, tt_emb, pos_emb,
                             gamma, beta, *, eps=1e-12):
    S = token_ids.shape[1]
    w = jnp.take(word_emb.astype(jnp.float32), token_ids, axis=0)
    t = jnp.take(tt_emb.astype(jnp.float32), segment_ids, axis=0)
    p = pos_emb[:S].astype(jnp.float32)[None, :, :]
    emb = w + t + p
    mean = jnp.mean(emb, axis=-1, keepdims=True)
    var = jnp.mean((emb - mean) ** 2, axis=-1, keepdims=True)
    norm = (emb - mean) * lax.rsqrt(var + eps)
    return norm * gamma + beta


if __name__ == "__main__":
    # Small, deterministic config consistent with BertEmbedding.__init__.
    VOCAB, E, MAX_SEQ, NUM_TT, PAD_ID, EPS = 512, 128, 64, 2, 0, 1e-12
    B, S = 2, 16

    key = jax.random.PRNGKey(0)
    k_w, k_p, k_t, k_g, k_b, k_tok, k_seg = jax.random.split(key, 7)

    word_emb = 0.02 * jax.random.normal(k_w, (VOCAB, E), dtype=jnp.float32)
    word_emb = word_emb.at[PAD_ID].set(0.0)                  # padding_idx = 0
    pos_emb = 0.02 * jax.random.normal(k_p, (MAX_SEQ, E), dtype=jnp.float32)
    tt_emb = 0.02 * jax.random.normal(k_t, (NUM_TT, E), dtype=jnp.float32)
    gamma = 1.0 + 0.1 * jax.random.normal(k_g, (E,), dtype=jnp.float32)
    beta = 0.1 * jax.random.normal(k_b, (E,), dtype=jnp.float32)

    token_ids = jax.random.randint(k_tok, (B, S), 0, VOCAB, dtype=jnp.int32)
    segment_ids = jax.random.randint(k_seg, (B, S), 0, NUM_TT, dtype=jnp.int32)

    # 1) f32 tables (single seq tile per batch row).
    ref = bert_embedding_reference(token_ids, segment_ids, word_emb, tt_emb,
                                   pos_emb, gamma, beta, eps=EPS)
    out_f32 = jax.block_until_ready(
        bert_embedding(token_ids, segment_ids, word_emb, tt_emb, pos_emb,
                       gamma, beta, eps=EPS))
    assert out_f32.shape == (B, S, E)
    assert jnp.allclose(out_f32, ref, atol=1e-5, rtol=1e-5), "f32 mismatch"

    # 2) bf16 tables (perf path: halved DMA bytes), f32 accumulation/LayerNorm.
    w_bf, t_bf, p_bf = (word_emb.astype(jnp.bfloat16), tt_emb.astype(jnp.bfloat16),
                        pos_emb.astype(jnp.bfloat16))
    ref_bf = bert_embedding_reference(token_ids, segment_ids, w_bf, t_bf, p_bf,
                                      gamma, beta, eps=EPS)
    out_bf = jax.block_until_ready(
        bert_embedding(token_ids, segment_ids, w_bf, t_bf, p_bf,
                       gamma, beta, eps=EPS))
    assert jnp.allclose(out_bf, ref_bf, atol=1e-4, rtol=1e-4), "bf16 mismatch"

    # 3) multi-tile grid + sequence padding path (S=20, tile_s=8 -> S_pad=24).
    S2 = 20
    tok2 = jax.random.randint(k_tok, (B, S2), 0, VOCAB, dtype=jnp.int32)
    seg2 = jax.random.randint(k_seg, (B, S2), 0, NUM_TT, dtype=jnp.int32)
    ref2 = bert_embedding_reference(tok2, seg2, word_emb, tt_emb, pos_emb,
                                    gamma, beta, eps=EPS)
    out2 = jax.block_until_ready(
        bert_embedding(tok2, seg2, word_emb, tt_emb, pos_emb, gamma, beta,
                       eps=EPS, tile_s_target=8))
    assert jnp.allclose(out2, ref2, atol=1e-5, rtol=1e-5), "tiled mismatch"

    print("KERNEL_OK")
</pallas_src>

<mosaic_0001>
module attributes {stable_mosaic.version = 11 : i64} {
  func.func @bert_embedding_kernel(%arg0: i32, %arg1: i32, %arg2: memref<2x16xi32, #tpu.memory_space<smem>>, %arg3: memref<1x16x1xi32, #tpu.memory_space<vmem>>, %arg4: memref<512x128xf32, #tpu.memory_space<any>>, %arg5: memref<8x128xf32, #tpu.memory_space<vmem>>, %arg6: memref<16x128xf32, #tpu.memory_space<vmem>>, %arg7: memref<1x128xf32, #tpu.memory_space<vmem>>, %arg8: memref<1x128xf32, #tpu.memory_space<vmem>>, %arg9: memref<1x16x128xf32, #tpu.memory_space<vmem>>, %arg10: memref<16x128xf32, #tpu.memory_space<vmem>>, %arg11: memref<1x!tpu.dma_semaphore, #tpu.memory_space<semaphore_mem>>) attributes {dimension_semantics = [#tpu.dimension_semantics<parallel>, #tpu.dimension_semantics<parallel>], iteration_bounds = array<i64: 2, 1>, scalar_prefetch = 1 : i64, scratch_operands = 2 : i64, tpu.core_type = #tpu.core_type<tc>, window_params = [{transform_indices = @transform_0, window_bounds = array<i64: 1, 16, 1>}, {}, {pipeline_mode = #tpu.pipeline_mode<synchronous>, transform_indices = @transform_2, window_bounds = array<i64: 8, 128>}, {transform_indices = @transform_3, window_bounds = array<i64: 16, 128>}, {pipeline_mode = #tpu.pipeline_mode<synchronous>, transform_indices = @transform_4, window_bounds = array<i64: 1, 128>}, {pipeline_mode = #tpu.pipeline_mode<synchronous>, transform_indices = @transform_5, window_bounds = array<i64: 1, 128>}, {transform_indices = @transform_6, window_bounds = array<i64: 1, 16, 128>}]} {
    %c16_i32 = arith.constant 16 : i32
    %0 = arith.muli %arg1, %c16_i32 : i32
    %c0_i32 = arith.constant 0 : i32
    %c16_i32_0 = arith.constant 16 : i32
    %1 = arith.addi %c0_i32, %c16_i32_0 : i32
    %c1_i32 = arith.constant 1 : i32
    scf.for %arg12 = %c0_i32 to %1 step %c1_i32  : i32 {
      %c1_i32_31 = arith.constant 1 : i32
      %55 = arith.muli %arg12, %c1_i32_31 : i32
      %c0_i32_32 = arith.constant 0 : i32
      %56 = arith.addi %c0_i32_32, %55 : i32
      %57 = arith.addi %0, %56 : i32
      %58 = arith.index_cast %arg0 : i32 to index
      %59 = arith.index_cast %57 : i32 to index
      %60 = memref.load %arg2[%58, %59] : memref<2x16xi32, #tpu.memory_space<smem>>
      %c0_i32_33 = arith.constant 0 : i32
      %c0_i32_34 = arith.constant 0 : i32
      %61 = tpu.memref_slice %arg4[%60, %c0_i32_34] : memref<512x128xf32, #tpu.memory_space<any>> -> memref<1x128xf32, #tpu.memory_space<any>>
      %c0_i32_35 = arith.constant 0 : i32
      %62 = tpu.memref_slice %arg10[%56, %c0_i32_35] : memref<16x128xf32, #tpu.memory_space<vmem>> -> memref<1x128xf32, #tpu.memory_space<vmem>>
      %63 = tpu.memref_slice %arg11[%c0_i32_33] : memref<1x!tpu.dma_semaphore, #tpu.memory_space<semaphore_mem>> -> memref<1x!tpu.dma_semaphore, #tpu.memory_space<semaphore_mem>>
      %64 = tpu.memref_squeeze %63 : memref<1x!tpu.dma_semaphore, #tpu.memory_space<semaphore_mem>> -> memref<!tpu.dma_semaphore, #tpu.memory_space<semaphore_mem>>
      tpu.enqueue_dma source(%61 : memref<1x128xf32, #tpu.memory_space<any>>) target(%62 : memref<1x128xf32, #tpu.memory_space<vmem>>) target_semaphore(%64 : memref<!tpu.dma_semaphore, #tpu.memory_space<semaphore_mem>>)
    }
    %c16_i32_1 = arith.constant 16 : i32
    %c0 = arith.constant 0 : index
    %c0_2 = arith.constant 0 : index
    %c0_3 = arith.constant 0 : index
    %2 = vector.load %arg3[%c0, %c0_2, %c0_3] : memref<1x16x1xi32, #tpu.memory_space<vmem>>, vector<1x16x1xi32>
    %3 = vector.shape_cast %2 : vector<1x16x1xi32> to vector<16x1xi32>
    %cst = arith.constant 0.000000e+00 : f32
    %4 = vector.broadcast %cst : f32 to vector<16x128xf32>
    %c0_i32_4 = arith.constant 0 : i32
    %5 = vector.broadcast %c0_i32_4 : i32 to vector<16x1xi32>
    %6 = arith.cmpi eq, %3, %5 : vector<16x1xi32>
    %c0_5 = arith.constant 0 : index
    %c0_6 = arith.constant 0 : index
    %7 = vector.load %arg5[%c0_5, %c0_6] : memref<8x128xf32, #tpu.memory_space<vmem>>, vector<1x128xf32>
    %cst_7 = arith.constant 0.000000e+00 : f32
    %8 = vector.shape_cast %6 : vector<16x1xi1> to vector<16x1xi1>
    %9 = vector.broadcast %8 : vector<16x1xi1> to vector<16x128xi1>
    %10 = vector.shape_cast %7 : vector<1x128xf32> to vector<1x128xf32>
    %11 = vector.broadcast %10 : vector<1x128xf32> to vector<16x128xf32>
    %12 = vector.broadcast %cst_7 : f32 to vector<16x128xf32>
    %13 = arith.select %9, %11, %12 : vector<16x128xi1>, vector<16x128xf32>
    %14 = arith.addf %4, %13 : vector<16x128xf32>
    %c1_i32_8 = arith.constant 1 : i32
    %15 = vector.broadcast %c1_i32_8 : i32 to vector<16x1xi32>
    %16 = arith.cmpi eq, %3, %15 : vector<16x1xi32>
    %c1 = arith.constant 1 : index
    %c0_9 = arith.constant 0 : index
    %17 = vector.load %arg5[%c1, %c0_9] : memref<8x128xf32, #tpu.memory_space<vmem>>, vector<1x128xf32>
    %cst_10 = arith.constant 0.000000e+00 : f32
    %18 = vector.shape_cast %16 : vector<16x1xi1> to vector<16x1xi1>
    %19 = vector.broadcast %18 : vector<16x1xi1> to vector<16x128xi1>
    %20 = vector.shape_cast %17 : vector<1x128xf32> to vector<1x128xf32>
    %21 = vector.broadcast %20 : vector<1x128xf32> to vector<16x128xf32>
    %22 = vector.broadcast %cst_10 : f32 to vector<16x128xf32>
    %23 = arith.select %19, %21, %22 : vector<16x128xi1>, vector<16x128xf32>
    %24 = arith.addf %14, %23 : vector<16x128xf32>
    %c0_11 = arith.constant 0 : index
    %c0_12 = arith.constant 0 : index
    %25 = vector.load %arg6[%c0_11, %c0_12] : memref<16x128xf32, #tpu.memory_space<vmem>>, vector<16x128xf32>
    %26 = arith.addf %24, %25 : vector<16x128xf32>
    %c0_i32_13 = arith.constant 0 : i32
    %c16_i32_14 = arith.constant 16 : i32
    %27 = arith.addi %c0_i32_13, %c16_i32_14 : i32
    %c1_i32_15 = arith.constant 1 : i32
    scf.for %arg12 = %c0_i32_13 to %27 step %c1_i32_15  : i32 {
      %c1_i32_31 = arith.constant 1 : i32
      %55 = arith.muli %arg12, %c1_i32_31 : i32
      %c0_i32_32 = arith.constant 0 : i32
      %56 = arith.addi %c0_i32_32, %55 : i32
      %c0_i32_33 = arith.constant 0 : i32
      %c0_i32_34 = arith.constant 0 : i32
      %c0_i32_35 = arith.constant 0 : i32
      %57 = tpu.memref_slice %arg4[%c0_i32_34, %c0_i32_35] : memref<512x128xf32, #tpu.memory_space<any>> -> memref<1x128xf32, #tpu.memory_space<any>>
      %c0_i32_36 = arith.constant 0 : i32
      %58 = tpu.memref_slice %arg10[%56, %c0_i32_36] : memref<16x128xf32, #tpu.memory_space<vmem>> -> memref<1x128xf32, #tpu.memory_space<vmem>>
      %59 = tpu.memref_slice %arg11[%c0_i32_33] : memref<1x!tpu.dma_semaphore, #tpu.memory_space<semaphore_mem>> -> memref<1x!tpu.dma_semaphore, #tpu.memory_space<semaphore_mem>>
      %60 = tpu.memref_squeeze %59 : memref<1x!tpu.dma_semaphore, #tpu.memory_space<semaphore_mem>> -> memref<!tpu.dma_semaphore, #tpu.memory_space<semaphore_mem>>
      tpu.wait_dma2 semaphore(%60 : memref<!tpu.dma_semaphore, #tpu.memory_space<semaphore_mem>>) src(%57 : memref<1x128xf32, #tpu.memory_space<any>>) dst(%58 : memref<1x128xf32, #tpu.memory_space<vmem>>)
    }
    %c16_i32_16 = arith.constant 16 : i32
    %c0_17 = arith.constant 0 : index
    %c0_18 = arith.constant 0 : index
    %28 = vector.load %arg10[%c0_17, %c0_18] : memref<16x128xf32, #tpu.memory_space<vmem>>, vector<16x128xf32>
    %29 = arith.addf %28, %26 : vector<16x128xf32>
    %cst_19 = arith.constant dense<0.000000e+00> : vector<16xf32>
    %30 = vector.multi_reduction <add>, %29, %cst_19 [1] : vector<16x128xf32> to vector<16xf32>
    %31 = vector.shape_cast %30 : vector<16xf32> to vector<16x1xf32>
    %cst_20 = arith.constant 1.280000e+02 : f32
    %32 = vector.broadcast %cst_20 : f32 to vector<16x1xf32>
    %33 = arith.divf %31, %32 : vector<16x1xf32>
    %34 = vector.broadcast %33 : vector<16x1xf32> to vector<16x128xf32>
    %35 = arith.subf %29, %34 : vector<16x128xf32>
    %36 = arith.mulf %35, %35 : vector<16x128xf32>
    %cst_21 = arith.constant dense<0.000000e+00> : vector<16xf32>
    %37 = vector.multi_reduction <add>, %36, %cst_21 [1] : vector<16x128xf32> to vector<16xf32>
    %38 = vector.shape_cast %37 : vector<16xf32> to vector<16x1xf32>
    %cst_22 = arith.constant 1.280000e+02 : f32
    %39 = vector.broadcast %cst_22 : f32 to vector<16x1xf32>
    %40 = arith.divf %38, %39 : vector<16x1xf32>
    %cst_23 = arith.constant 9.99999996E-13 : f32
    %41 = vector.broadcast %cst_23 : f32 to vector<16x1xf32>
    %42 = arith.addf %40, %41 : vector<16x1xf32>
    %43 = math.rsqrt %42 : vector<16x1xf32>
    %44 = vector.broadcast %43 : vector<16x1xf32> to vector<16x128xf32>
    %45 = arith.mulf %35, %44 : vector<16x128xf32>
    %c0_24 = arith.constant 0 : index
    %c0_25 = arith.constant 0 : index
    %46 = vector.load %arg7[%c0_24, %c0_25] : memref<1x128xf32, #tpu.memory_space<vmem>>, vector<1x128xf32>
    %47 = vector.broadcast %46 : vector<1x128xf32> to vector<16x128xf32>
    %48 = arith.mulf %45, %47 : vector<16x128xf32>
    %c0_26 = arith.constant 0 : index
    %c0_27 = arith.constant 0 : index
    %49 = vector.load %arg8[%c0_26, %c0_27] : memref<1x128xf32, #tpu.memory_space<vmem>>, vector<1x128xf32>
    %50 = vector.broadcast %49 : vector<1x128xf32> to vector<16x128xf32>
    %51 = arith.addf %48, %50 : vector<16x128xf32>
    %c0_28 = arith.constant 0 : index
    %c0_29 = arith.constant 0 : index
    %c0_30 = arith.constant 0 : index
    %52 = vector.load %arg9[%c0_28, %c0_29, %c0_30] : memref<1x16x128xf32, #tpu.memory_space<vmem>>, vector<1x16x128xf32>
    %53 = vector.shape_cast %52 : vector<1x16x128xf32> to vector<16x128xf32>
    %54 = vector.shape_cast %51 : vector<16x128xf32> to vector<1x16x128xf32>
    tpu.vector_store %arg9[%c0_28, %c0_29, %c0_30], %54 {strides = array<i32>} : memref<1x16x128xf32, #tpu.memory_space<vmem>>, vector<1x16x128xf32>,
    return
  }
  func.func @transform_0(%arg0: i32, %arg1: i32, %arg2: memref<2x16xi32, #tpu.memory_space<smem>>) -> (i32, i32, i32) {
    %c0_i32 = arith.constant 0 : i32
    %c0_i32_0 = arith.constant 0 : i32
    return %arg0, %arg1, %c0_i32 : i32, i32, i32
  }
  func.func @transform_2(%arg0: i32, %arg1: i32, %arg2: memref<2x16xi32, #tpu.memory_space<smem>>) -> (i32, i32) {
    %c0_i32 = arith.constant 0 : i32
    %c0_i32_0 = arith.constant 0 : i32
    %c0_i32_1 = arith.constant 0 : i32
    return %c0_i32, %c0_i32_0 : i32, i32
  }
  func.func @transform_3(%arg0: i32, %arg1: i32, %arg2: memref<2x16xi32, #tpu.memory_space<smem>>) -> (i32, i32) {
    %c0_i32 = arith.constant 0 : i32
    %c0_i32_0 = arith.constant 0 : i32
    return %arg1, %c0_i32 : i32, i32
  }
  func.func @transform_4(%arg0: i32, %arg1: i32, %arg2: memref<2x16xi32, #tpu.memory_space<smem>>) -> (i32, i32) {
    %c0_i32 = arith.constant 0 : i32
    %c0_i32_0 = arith.constant 0 : i32
    %c0_i32_1 = arith.constant 0 : i32
    return %c0_i32, %c0_i32_0 : i32, i32
  }
  func.func @transform_5(%arg0: i32, %arg1: i32, %arg2: memref<2x16xi32, #tpu.memory_space<smem>>) -> (i32, i32) {
    %c0_i32 = arith.constant 0 : i32
    %c0_i32_0 = arith.constant 0 : i32
    %c0_i32_1 = arith.constant 0 : i32
    return %c0_i32, %c0_i32_0 : i32, i32
  }
  func.func @transform_6(%arg0: i32, %arg1: i32, %arg2: memref<2x16xi32, #tpu.memory_space<smem>>) -> (i32, i32, i32) {
    %c0_i32 = arith.constant 0 : i32
    %c0_i32_0 = arith.constant 0 : i32
    return %arg0, %arg1, %c0_i32 : i32, i32, i32
  }
}

</mosaic_0001>

<llo_original>
// kernel: tpu_custom_call.1
$region0: #{tpu_custom_call.1}
  #allocation0 [shape = 'u32[]', space=smem, size = 0x4, offset = 0x4, fixed_abs, tag = 'smem constant byte address 0x4 - core index']
  #allocation1 [shape = 'u32[144,128]{1,0:T(1,128)}', space=vmem, size = 0x12000, scoped, tag = 'internal scratch']
  #allocation2 [shape = 'f32[16,128]{1,0:T(8,128)}', space=vmem, size = 0x2000, scoped, tag = 'scratch operand']
  #allocation3 [shape = 's32[1]{0}', space=sflag, size = 0x4, scoped, tag = 'scratch operand']
  #allocation4 [shape = 's32[1]{0}', space=sflag, size = 0x4, scoped, tag = 'scoped memory for tpu_custom_call.1']
  #allocation5 [shape = 'u8[1024]{0}', space=smem, size = 0x400, scoped, tag = 'prefetched SMEM operand 0']
  #allocation8 [shape = 's32[]', space=sflag, size = 0x4, offset = 0, fixed_abs, tag = 'sflag constant byte address 0x0 - dummy sync flag']
  #allocation9 [shape = 's32[]', space=sflag, size = 0x4, offset = 0, fixed_abs, tag = 'sflag constant byte address 0x0 - dummy sync flag']
  #allocation10 [shape = 'u32[]', space=smem, size = 0x4, offset = 0x44, fixed_abs, tag = 'smem constant byte address 0x44 - assertion arg 0']
  #allocation11 [shape = 'u32[]', space=smem, size = 0x4, offset = 0x48, fixed_abs, tag = 'smem constant byte address 0x48 - assertion arg 1']
  %s0 = inlined_call_operand.vmem [shape: s32[2,16], index: 0, kind: input, shape index: {}]
  %s1 = inlined_call_operand.vmem [shape: s32[2,16,1], index: 1, kind: input, shape index: {}]
  %s2 = inlined_call_operand.hbm [shape: f32[512,128], index: 2, kind: input, shape index: {}]
  %s3 = inlined_call_operand.vmem [shape: f32[8,128], index: 3, kind: input, shape index: {}]
  %s4 = inlined_call_operand.vmem [shape: f32[16,128], index: 4, kind: input, shape index: {}]
  %s5 = inlined_call_operand.vmem [shape: f32[1,128], index: 5, kind: input, shape index: {}]
  %s6 = inlined_call_operand.vmem [shape: f32[1,128], index: 6, kind: input, shape index: {}]
  %s7 = inlined_call_operand.hbm [shape: f32[2,16,128], index: 7, kind: output, shape index: {}]
  %s8 = sld [smem:[#allocation0]]
  $region71: #{tpu_custom_call.1} parent=0
    _
  %s10 = ssub.s32 1, %s8
  %s11 = scalar_select 0, %s10, %s8
  %s12 = sshll.u32 %s0, 4
  %s13 = int_to_ptr.vmem [resolvable:$true] %s12
  %15 = dma.vmem_to_smem %s13, 32, [#allocation5], [#allocation4]
  %16 = dma.done [#allocation4], 32
  %17 = sfence
  $region1: #{tpu_custom_call.1} parent=0
    #allocation6 [shape = 'u8[16384]{0}', space=vmem, size = 0x4000, scoped, tag = 'output window, operand 0']
    #allocation7 [shape = 's32[2]{0}', space=sflag, size = 0x8, scoped, tag = 'scoped memory for tpu_custom_call.1']
    %18 = vsyncpa [#allocation7], 0
    %s19 = scalar_lea.sflag [#allocation7], 1
    %20 = vsyncpa %s19, 0
    loop: start=0, step=1, limit=4
    $region2: #{tpu_custom_call.1} parent=1 // loop_pre_header
      _
    $region3: #{tpu_custom_call.1} parent=1 // loop_header
      %s22 = sphi 0, %s26
      %p23 = scmp.ge.s32.totalorder %s22, 4
      %s29 = sphi 0, %s41
      %s30 = sphi 0, %s37
      %s31 = sphi 0, %s29
      %s32 = sphi 0, %s30
      %s33 = sphi 0, %s31
      %s34 = sphi 0, %s32
      %s46 = sphi 0, %s48
      %s49 = sphi 0, %s46
      %s50 = sphi 0, %s49
      %s66 = sphi 0, %s50
      %s70 = sphi 0, %s70
      %s72 = sphi 0, %s70
      %s73 = sphi 0, %s72
      %s87 = sphi 0, %s73
      %s93 = sphi 0, %s95
      %s96 = sphi 0, %s93
      %s97 = sphi 0, %s96
      %s113 = sphi 0, %s97
      %s117 = sphi 0, %s117
      %s119 = sphi 0, %s117
      %s120 = sphi 0, %s119
      %s134 = sphi 0, %s120
      %s138 = sphi 0, %s138
      %s140 = sphi 0, %s138
      %s141 = sphi 0, %s140
      %s155 = sphi 0, %s141
      %s163 = sphi 0, %s165
      %s166 = sphi 0, %s163
      %s167 = sphi 0, %s166
      %s183 = sphi 0, %s167
    $region4: #{tpu_custom_call.1} parent=1 // loop_header_branch
      %25 = sbr.rel (%p23) target = $region8
    $region5: #{tpu_custom_call.1} parent=1 // loop_body
      %s27 = ssub.s32 %s22, 1
      %s28 = ssub.s32 %s22, 2
      %s35 = sadd.s32 1, %s30
      %p36 = scmp.ge.s32.totalorder %s35, 1
      %s37 = scalar_select %p36, 0, %s35
      %s38 = sadd.s32 1, %s29
      %s39 = scalar_select %p36, %s38, %s29
      %p40 = scmp.ge.s32.totalorder %s39, 2
      %s41 = scalar_select %p40, 0, %s39
      %s42 = ssub.s32 %s29, %s41
      %s43 = ssub.s32 %s30, %s37
      %s44 = sor.u32 %s42, %s43
      %p45 = scmp.eq.s32.totalorder %s44, 0
      %s47 = sadd.s32 %s46, 1
      %s48 = scalar_select %p45, %s46, %s47
      %p51 = pneg %p45
      %p52 = scmp.eq.s32.totalorder %s22, 1
      %p53 = por %p51, %p52
      %p54 = scmp.ne.s32.totalorder %s46, %s49
      %p55 = scmp.eq.s32.totalorder %s22, 0
      %p56 = por %p54, %p55
      %p57 = scmp.ne.s32.totalorder %s46, %s49
      %p58 = scmp.eq.s32.totalorder %s27, 1
      %p59 = por %p57, %p58
      %p60 = scmp.ne.s32.totalorder %s49, %s50
      %p61 = scmp.eq.s32.totalorder %s27, 0
      %p62 = por %p60, %p61
      %p63 = scmp.ne.s32.totalorder %s49, %s50
      %p64 = scmp.eq.s32.totalorder %s28, 1
      %p65 = por %p63, %p64
      %p67 = scmp.ne.s32.totalorder %s50, %s66
      %p68 = scmp.eq.s32.totalorder %s28, 0
      %p69 = por %p67, %p68
      %s71 = sadd.s32 %s70, 1
      %p74 = scmp.eq.s32.totalorder %s22, 1
      %p75 = scmp.ne.s32.totalorder %s70, %s72
      %p76 = scmp.eq.s32.totalorder %s22, 0
      %p77 = por %p75, %p76
      %p78 = scmp.ne.s32.totalorder %s70, %s72
      %p79 = scmp.eq.s32.totalorder %s27, 1
      %p80 = por %p78, %p79
      %p81 = scmp.ne.s32.totalorder %s72, %s73
      %p82 = scmp.eq.s32.totalorder %s27, 0
      %p83 = por %p81, %p82
      %p84 = scmp.ne.s32.totalorder %s72, %s73
      %p85 = scmp.eq.s32.totalorder %s28, 1
      %p86 = por %p84, %p85
      %p88 = scmp.ne.s32.totalorder %s73, %s87
      %p89 = scmp.eq.s32.totalorder %s28, 0
      %p90 = por %p88, %p89
      %s91 = ssub.s32 %s30, %s37
      %p92 = scmp.eq.s32.totalorder %s91, 0
      %s94 = sadd.s32 %s93, 1
      %s95 = scalar_select %p92, %s93, %s94
      %p98 = pneg %p92
      %p99 = scmp.eq.s32.totalorder %s22, 1
      %p100 = por %p98, %p99
      %p101 = scmp.ne.s32.totalorder %s93, %s96
      %p102 = scmp.eq.s32.totalorder %s22, 0
      %p103 = por %p101, %p102
      %p104 = scmp.ne.s32.totalorder %s93, %s96
      %p105 = scmp.eq.s32.totalorder %s27, 1
      %p106 = por %p104, %p105
      %p107 = scmp.ne.s32.totalorder %s96, %s97
      %p108 = scmp.eq.s32.totalorder %s27, 0
      %p109 = por %p107, %p108
      %p110 = scmp.ne.s32.totalorder %s96, %s97
      %p111 = scmp.eq.s32.totalorder %s28, 1
      %p112 = por %p110, %p111
      %p114 = scmp.ne.s32.totalorder %s97, %s113
      %p115 = scmp.eq.s32.totalorder %s28, 0
      %p116 = por %p114, %p115
      %s118 = sadd.s32 %s117, 1
      %p121 = scmp.eq.s32.totalorder %s22, 1
      %p122 = scmp.ne.s32.totalorder %s117, %s119
      %p123 = scmp.eq.s32.totalorder %s22, 0
      %p124 = por %p122, %p123
      %p125 = scmp.ne.s32.totalorder %s117, %s119
      %p126 = scmp.eq.s32.totalorder %s27, 1
      %p127 = por %p125, %p126
      %p128 = scmp.ne.s32.totalorder %s119, %s120
      %p129 = scmp.eq.s32.totalorder %s27, 0
      %p130 = por %p128, %p129
      %p131 = scmp.ne.s32.totalorder %s119, %s120
      %p132 = scmp.eq.s32.totalorder %s28, 1
      %p133 = por %p131, %p132
      %p135 = scmp.ne.s32.totalorder %s120, %s134
      %p136 = scmp.eq.s32.totalorder %s28, 0
      %p137 = por %p135, %p136
      %s139 = sadd.s32 %s138, 1
      %p142 = scmp.eq.s32.totalorder %s22, 1
      %p143 = scmp.ne.s32.totalorder %s138, %s140
      %p144 = scmp.eq.s32.totalorder %s22, 0
      %p145 = por %p143, %p144
      %p146 = scmp.ne.s32.totalorder %s138, %s140
      %p147 = scmp.eq.s32.totalorder %s27, 1
      %p148 = por %p146, %p147
      %p149 = scmp.ne.s32.totalorder %s140, %s141
      %p150 = scmp.eq.s32.totalorder %s27, 0
      %p151 = por %p149, %p150
      %p152 = scmp.ne.s32.totalorder %s140, %s141
      %p153 = scmp.eq.s32.totalorder %s28, 1
      %p154 = por %p152, %p153
      %p156 = scmp.ne.s32.totalorder %s141, %s155
      %p157 = scmp.eq.s32.totalorder %s28, 0
      %p158 = por %p156, %p157
      %s159 = ssub.s32 %s29, %s41
      %s160 = ssub.s32 %s30, %s37
      %s161 = sor.u32 %s159, %s160
      %p162 = scmp.eq.s32.totalorder %s161, 0
      %s164 = sadd.s32 %s163, 1
      %s165 = scalar_select %p162, %s163, %s164
      %p168 = pneg %p162
      %p169 = scmp.eq.s32.totalorder %s22, 1
      %p170 = por %p168, %p169
      %p171 = scmp.ne.s32.totalorder %s163, %s166
      %p172 = scmp.eq.s32.totalorder %s22, 0
      %p173 = por %p171, %p172
      %p174 = scmp.ne.s32.totalorder %s163, %s166
      %p175 = scmp.eq.s32.totalorder %s27, 1
      %p176 = por %p174, %p175
      %p177 = scmp.ne.s32.totalorder %s166, %s167
      %p178 = scmp.eq.s32.totalorder %s27, 0
      %p179 = por %p177, %p178
      %p180 = scmp.ne.s32.totalorder %s166, %s167
      %p181 = scmp.eq.s32.totalorder %s28, 1
      %p182 = por %p180, %p181
      %p184 = scmp.ne.s32.totalorder %s167, %s183
      %p185 = scmp.eq.s32.totalorder %s28, 0
      %p186 = por %p184, %p185
      %p187 = scmp.le.s32.totalorder 1, %s22
      %p188 = scmp.lt.s32.totalorder %s22, 3
      %p189 = pnand %p187, %p188
      %p190 = pneg %p189
      // Predicated region
      $region9: #{tpu_custom_call.1} parent=5 // pred_check
        _
      $region10: #{tpu_custom_call.1} parent=5 // pred_check_branch
        %192 = sbr.rel (%p189) target = $region12
      $region11: #{tpu_custom_call.1} parent=5 // pred_region
        %s193 = ssub.s32 %s22, 1
        // Predicated region
        $region13: #{tpu_custom_call.1} parent=11 // pred_check
          %p194 = pneg %p83
        $region14: #{tpu_custom_call.1} parent=11 // pred_check_branch
          %196 = sbr.rel (%p194) target = $region16
        $region15: #{tpu_custom_call.1} parent=11 // pred_region
          _
        $region16: #{tpu_custom_call.1} parent=11 // pred_fallthru
          _
        // Predicated region
        $region17: #{tpu_custom_call.1} parent=11 // pred_check
          %p197 = pneg %p109
        $region18: #{tpu_custom_call.1} parent=11 // pred_check_branch
          %199 = sbr.rel (%p197) target = $region20
        $region19: #{tpu_custom_call.1} parent=11 // pred_region
          %s200 = smul.u32 2, %s32
          %p201 = scmp.lt.s32.totalorder %s200, 1
          %s202 = scalar_select %p201, %s200, 1
          %s203 = smul.addr %s202, 8
          %s204 = scalar_lea.vmem %s4, %s203
          %s205 = smul.u32 2, %s32
        $region20: #{tpu_custom_call.1} parent=11 // pred_fallthru
          _
        // Predicated region
        $region21: #{tpu_custom_call.1} parent=11 // pred_check
          %p206 = pneg %p130
        $region22: #{tpu_custom_call.1} parent=11 // pred_check_branch
          %208 = sbr.rel (%p206) target = $region24
        $region23: #{tpu_custom_call.1} parent=11 // pred_region
          _
        $region24: #{tpu_custom_call.1} parent=11 // pred_fallthru
          _
        // Predicated region
        $region25: #{tpu_custom_call.1} parent=11 // pred_check
          %p209 = pneg %p151
        $region26: #{tpu_custom_call.1} parent=11 // pred_check_branch
          %211 = sbr.rel (%p209) target = $region28
        $region27: #{tpu_custom_call.1} parent=11 // pred_region
          _
        $region28: #{tpu_custom_call.1} parent=11 // pred_fallthru
          _
      $region12: #{tpu_custom_call.1} parent=5 // pred_fallthru
        _
      %p212 = scmp.lt.s32.totalorder %s22, 2
      // Predicated region
      $region29: #{tpu_custom_call.1} parent=5 // pred_check
        %p213 = pneg %p212
      $region30: #{tpu_custom_call.1} parent=5 // pred_check_branch
        %215 = sbr.rel (%p213) target = $region32
      $region31: #{tpu_custom_call.1} parent=5 // pred_region
        // Predicated region
        $region33: #{tpu_custom_call.1} parent=31 // pred_check
          %p216 = pneg %p56
        $region34: #{tpu_custom_call.1} parent=31 // pred_check_branch
          %218 = sbr.rel (%p216) target = $region36
        $region35: #{tpu_custom_call.1} parent=31 // pred_region
          %s219 = smul.u32 2, %s30
          %p220 = scmp.lt.s32.totalorder %s29, 1
          %s221 = scalar_select %p220, %s29, 1
          %p222 = scmp.lt.s32.totalorder %s219, 1
          %s223 = scalar_select %p222, %s219, 1
          %s224 = smul.addr %s221, 2
          %s225 = sadd.s32 %s223, %s224
          %s226 = smul.addr %s225, 8
          %s227 = scalar_lea.vmem %s1, %s226
          %s228 = smul.u32 2, %s30
        $region36: #{tpu_custom_call.1} parent=31 // pred_fallthru
          _
      $region32: #{tpu_custom_call.1} parent=5 // pred_fallthru
        _
      %p229 = scmp.le.s32.totalorder 1, %s22
      %p230 = scmp.lt.s32.totalorder %s22, 3
      %p231 = pnand %p229, %p230
      %p232 = pneg %p231
      // Predicated region
      $region37: #{tpu_custom_call.1} parent=5 // pred_check
        _
      $region38: #{tpu_custom_call.1} parent=5 // pred_check_branch
        %234 = sbr.rel (%p231) target = $region40
      $region39: #{tpu_custom_call.1} parent=5 // pred_region
        %s235 = ssub.s32 %s22, 1
        %s236 = smul.u32 2, %s32
        %p237 = scmp.lt.s32.totalorder %s31, 1
        %s238 = scalar_select %p237, %s31, 1
        %p239 = scmp.lt.s32.totalorder %s236, 1
        %s240 = scalar_select %p239, %s236, 1
        %s241 = smul.addr %s238, 2
        %s242 = sadd.s32 %s240, %s241
        %s243 = smul.addr %s242, 8
        %s244 = scalar_lea.vmem %s1, %s243
        %p245 = pneg %p62
        %p246 = pneg %p59
        %p247 = pneg %p83
        %p248 = pneg %p80
        %s249 = smul.u32 2, %s32
        %p250 = scmp.lt.s32.totalorder %s249, 1
        %s251 = scalar_select %p250, %s249, 1
        %s252 = smul.addr %s251, 8
        %s253 = scalar_lea.vmem %s4, %s252
        %p254 = pneg %p109
        %p255 = pneg %p106
        %p256 = pneg %p130
        %p257 = pneg %p127
        %p258 = pneg %p151
        %p259 = pneg %p148
        %p260 = pneg %p179
        %p261 = pneg %p176
        %s262 = sand.u32 %s166, 1
        %s263 = scalar_lea.sflag [#allocation7], %s262
        %s264 = sand.u32 %s166, 1
        %s265 = smul.addr %s264, 16
        %s266 = scalar_lea.vmem [#allocation6], %s265
        %s267 = smul.u32 2, %s32
        %p268 = scmp.lt.s32.totalorder %s31, 1
        %s269 = scalar_select %p268, %s31, 1
        %p270 = scmp.lt.s32.totalorder %s267, 1
        %s271 = scalar_select %p270, %s267, 1
        %s272 = smul.addr %s269, 2
        %s273 = sadd.s32 %s271, %s272
        %s274 = smul.addr %s273, 8
        %s275 = scalar_lea.vmem %s1, %s274
        %s276 = smul.u32 2, %s32
        %s277 = smul.u32 2, %s32
        %p278 = scmp.lt.s32.totalorder %s277, 1
        %s279 = scalar_select %p278, %s277, 1
        %s280 = smul.addr %s279, 8
        %s281 = scalar_lea.vmem %s4, %s280
        %s282 = smul.u32 2, %s32
        %s283 = smul.u32 2, %s32
        %s284 = smul.u32 %s32, 16
        loop: start=0, step=1, limit=16
        $region41: #{tpu_custom_call.1} parent=39 // loop_pre_header
          _
        $region42: #{tpu_custom_call.1} parent=39 // loop_header
          %s286 = sphi 0, %s290
          %p287 = scmp.ge.s32.totalorder %s286, 16
        $region43: #{tpu_custom_call.1} parent=39 // loop_header_branch
          %289 = sbr.rel (%p287) target = $region47
        $region44: #{tpu_custom_call.1} parent=39 // loop_body
          %s291 = sadd.s32 %s284, %s286
          %s292 = sshra.s32 %s291, 7
          %s293 = sand.u32 %s291, 127
          %s294 = sadd.s32 %s292, %s31
          %s295 = smul.u32 %s294, 128
          %s296 = sshra.s32 %s291, 7
          %s297 = sand.u32 %s291, 127
          %s298 = sadd.s32 %s295, %s297
          %s299 = sld [smem:[#allocation5 + %s298]]
          %s300 = smul.addr %s299, 16
          %s301 = scalar_lea.hbm %s2, %s300
          %s302 = scalar_lea.vmem [#allocation2], %s286
          // Predicated region
          $region48: #{tpu_custom_call.1} parent=44 // pred_check
            _
          $region49: #{tpu_custom_call.1} parent=44 // pred_check_branch
            %304 = sbr.rel target = $region51
          $region50: #{tpu_custom_call.1} parent=44 // pred_region
            %305 = sst [smem:[#allocation10]] [#allocation9]
            %306 = sst [smem:[#allocation11]] [#allocation8]
          $region51: #{tpu_custom_call.1} parent=44 // pred_fallthru
            _
          %308 = shalt.err (0)
          %s310 = sshll.u32 %s302, 4
          %s311 = int_to_ptr.vmem [resolvable:$true] %s310
          %313 = dma.hbm_to_vmem [thread:$0]  %s301, 16, %s311, [#allocation3]
        $region45: #{tpu_custom_call.1} parent=39 // loop_footer
          %s290 = sadd.s32 1, %s286
        $region46: #{tpu_custom_call.1} parent=39 // loop_footer_branch
          %285 = sbr.rel target = $region42
        $region47: #{tpu_custom_call.1} parent=39 // loop_exit
          _
        %v314 = vld [vmem:[%s275] sm:$0xff]
        %v315 = vld [vmem:[%s275 + $0x8] sm:$0xff]
        %vm316 = vcmp.eq.s32.totalorder %v314, 0
        %vm317 = vcmp.eq.s32.totalorder %v315, 0
        %v318 = vld [vmem:[%s3] sm:$0x1]
        %v319 = vsel %vm316, 1, 0
        %v320 = vsel %vm317, 1, 0
        %321 = vset.pattern.permute.xlu0 0
        %322 = vperm.xlu0 %321, %v319
        %v323 = vpop.permute.xlu0 %322
        %324 = vset.pattern.permute.xlu0 0
        %325 = vperm.xlu0 %324, %v320
        %v326 = vpop.permute.xlu0 %325
        %vm327 = vcmp.eq.s32.totalorder %v323, 1
        %vm328 = vcmp.eq.s32.totalorder %v326, 1
        %v329 = vlaneseq
        %v330 = vshrl.u32 %v329, 7
        %v331 = vsub.s32 0, %v330
        %v332 = vrot.slane %v318, %v331
        %v333 = vsel %vm327, %v332, 0.0
        %v334 = vsel %vm328, %v332, 0.0
        %v335 = vadd.f32 %v333, 0.0
        %v336 = vadd.f32 %v334, 0.0
        %vm337 = vcmp.eq.s32.totalorder %v314, 1
        %vm338 = vcmp.eq.s32.totalorder %v315, 1
        %v339 = vld [vmem:[%s3 + $0x1] sm:$0x1]
        %v340 = vsel %vm337, 1, 0
        %v341 = vsel %vm338, 1, 0
        %342 = vset.pattern.permute.xlu0 0
        %343 = vperm.xlu0 %342, %v340
        %v344 = vpop.permute.xlu0 %343
        %345 = vset.pattern.permute.xlu0 0
        %346 = vperm.xlu0 %345, %v341
        %v347 = vpop.permute.xlu0 %346
        %vm348 = vcmp.eq.s32.totalorder %v344, 1
        %vm349 = vcmp.eq.s32.totalorder %v347, 1
        %v350 = vlaneseq
        %v351 = vshrl.u32 %v350, 7
        %v352 = vsub.s32 0, %v351
        %v353 = vrot.slane %v339, %v352
        %v354 = vsel %vm348, %v353, 0.0
        %v355 = vsel %vm349, %v353, 0.0
        %v356 = vadd.f32 %v335, %v354
        %v357 = vadd.f32 %v336, %v355
        %v358 = vld [vmem:[%s281] sm:$0xff]
        %v359 = vld [vmem:[%s281 + $0x8] sm:$0xff]
        %v360 = vadd.f32 %v356, %v358
        %v361 = vadd.f32 %v357, %v359
        loop: start=0, step=1, limit=16
        $region52: #{tpu_custom_call.1} parent=39 // loop_pre_header
          _
        $region53: #{tpu_custom_call.1} parent=39 // loop_header
          %s363 = sphi 0, %s367
          %p364 = scmp.ge.s32.totalorder %s363, 16
        $region54: #{tpu_custom_call.1} parent=39 // loop_header_branch
          %366 = sbr.rel (%p364) target = $region58
        $region55: #{tpu_custom_call.1} parent=39 // loop_body
          %s368 = smul.u32 1, 1
          %s369 = sshll.u32 %s368, 4
          %370 = dma.done [#allocation3], %s369
        $region56: #{tpu_custom_call.1} parent=39 // loop_footer
          %s367 = sadd.s32 1, %s363
        $region57: #{tpu_custom_call.1} parent=39 // loop_footer_branch
          %362 = sbr.rel target = $region53
        $region58: #{tpu_custom_call.1} parent=39 // loop_exit
          _
        %v371 = vld [vmem:[#allocation2] sm:$0xff]
        %v372 = vld [vmem:[#allocation2 + $0x8] sm:$0xff]
        %v373 = vadd.f32 %v371, %v360
        %v374 = vadd.f32 %v372, %v361
        %375 = vadd.xlane.f32.xlu0 %v373
        %v376 = vpop.xlane.xlu0 %375
        %377 = vadd.xlane.f32.xlu0 %v374
        %v378 = vpop.xlane.xlu0 %377
        %v379 = vrcp.pop 128.0
        %v380 = vmul.f32 %v376, %v379
        %v381 = vmul.f32 %v378, %v379
        %v382 = vsub.f32 %v373, %v380
        %v383 = vsub.f32 %v374, %v381
        %v384 = vmul.f32 %v382, %v382
        %v385 = vmul.f32 %v383, %v383
        %386 = vadd.xlane.f32.xlu0 %v384
        %v387 = vpop.xlane.xlu0 %386
        %388 = vadd.xlane.f32.xlu0 %v385
        %v389 = vpop.xlane.xlu0 %388
        %v390 = vmul.f32 %v387, %v379
        %v391 = vmul.f32 %v389, %v379
        %v392 = vadd.f32 %v390, 1e-12
        %v393 = vadd.f32 %v391, 1e-12
        %v394 = vrsqrt.pop %v392
        %v395 = vrsqrt.pop %v393
        %v396 = vmul.f32 %v382, %v394
        %v397 = vmul.f32 %v383, %v395
        %v398 = vld [vmem:[%s5] sm:$0x1]
        %v400 = vlaneseq
        %v401 = vshrl.u32 %v400, 7
        %v402 = vsub.s32 0, %v401
        %v403 = vrot.slane %v398, %v402
        %v405 = vmul.f32 %v396, %v403
        %v406 = vmul.f32 %v397, %v403
        %v407 = vld [vmem:[%s6] sm:$0x1]
        %v409 = vlaneseq
        %v410 = vshrl.u32 %v409, 7
        %v411 = vsub.s32 0, %v410
        %v412 = vrot.slane %v407, %v411
        %v414 = vadd.f32 %v405, %v412
        %v415 = vadd.f32 %v406, %v412
        %416 = vst [vmem:[%s266] sm:$0xff] %v414
        %417 = vst [vmem:[%s266 + $0x8] sm:$0xff] %v415
        %s418 = sand.u32 %s166, 1
        %s419 = scalar_lea.sflag [#allocation7], %s418
        %s420 = sand.u32 %s166, 1
        %s421 = smul.addr %s420, 16
        %s422 = scalar_lea.vmem [#allocation6], %s421
        // Predicated region
        $region59: #{tpu_custom_call.1} parent=39 // pred_check
          %p423 = pneg %p176
        $region60: #{tpu_custom_call.1} parent=39 // pred_check_branch
          %425 = sbr.rel (%p423) target = $region62
        $region61: #{tpu_custom_call.1} parent=39 // pred_region
          %s426 = smul.u32 2, %s32
          %s428 = ssub.s32 256, 256
          %429 = vsyncadd %s419, %s428
          %s430 = smul.addr %s31, 2
          %s431 = sadd.s32 %s426, %s430
          %s432 = smul.addr %s431, 128
          %s433 = scalar_lea.hbm %s7, %s432
          %s434 = sshll.u32 %s422, 4
          %s435 = int_to_ptr.vmem [resolvable:$true] %s434
          %440 = dma.vmem_to_hbm [thread:$0]  %s435, 256, %s433, %s419, 128, 128, 8
        $region62: #{tpu_custom_call.1} parent=39 // pred_fallthru
          _
      $region40: #{tpu_custom_call.1} parent=5 // pred_fallthru
        _
      %p441 = scmp.le.s32.totalorder 2, %s22
      // Predicated region
      $region63: #{tpu_custom_call.1} parent=5 // pred_check
        %p442 = pneg %p441
      $region64: #{tpu_custom_call.1} parent=5 // pred_check_branch
        %444 = sbr.rel (%p442) target = $region66
      $region65: #{tpu_custom_call.1} parent=5 // pred_region
        %s445 = ssub.s32 %s22, 2
        // Predicated region
        $region67: #{tpu_custom_call.1} parent=65 // pred_check
          %p446 = pneg %p182
        $region68: #{tpu_custom_call.1} parent=65 // pred_check_branch
          %448 = sbr.rel (%p446) target = $region70
        $region69: #{tpu_custom_call.1} parent=65 // pred_region
          %s449 = sand.u32 %s167, 1
          %s450 = scalar_lea.sflag [#allocation7], %s449
          %s451 = sand.u32 %s167, 1
          %s452 = smul.addr %s451, 16
          %s453 = scalar_lea.vmem [#allocation6], %s452
          %454 = dma.done %s450, 256
        $region70: #{tpu_custom_call.1} parent=65 // pred_fallthru
          _
      $region66: #{tpu_custom_call.1} parent=5 // pred_fallthru
        _
    $region6: #{tpu_custom_call.1} parent=1 // loop_footer
      %s26 = sadd.s32 1, %s22
    $region7: #{tpu_custom_call.1} parent=1 // loop_footer_branch
      %21 = sbr.rel target = $region3
    $region8: #{tpu_custom_call.1} parent=1 // loop_exit
      _
    %455 = vsyncpa [#allocation7], 1
    %s456 = scalar_lea.sflag [#allocation7], 1
    %457 = vsyncpa %s456, 1
  %458 = vsyncmov [#allocation3]
  %s459 = vpop.sfrf %458
  %p460 = scmp.eq.s32.totalorder %s459, 0
  %p461 = pneg %p460
  %463 = shalt.err (%p461)

</llo_original>
